<compile_context>
chip_gen: v7x
topology: tpu7x:2x2x1
jax: 0.10.0
libtpu: 0.0.40
codegen_flags: <defaults>
</compile_context>

<pallas_src>
import jax
import jax.numpy as jnp
from jax import lax
from jax.experimental import pallas as pl
from jax.experimental.pallas import tpu as pltpu


def _make_kernel(B, S, A):
    def kernel(x_ref, wt_ref, b_ref, o_ref):
        # x_ref : (B, S) int32 in SMEM   -- action ids, read as scalars
        # wt_ref: (A, A) f32  in VMEM    -- weight.T (pre-transposed in the wrapper)
        # b_ref : (1, A) f32  in VMEM    -- bias (lane-dim = A)
        # o_ref : (B, A) f32  in VMEM
        rows = []
        for b in range(B):  # B is small and static; per-row accumulation
            def body(s, acc):
                idx = x_ref[b, s]                        # SMEM scalar -> sreg
                # Dynamic sublane row gather of W^T + VPU add.
                # Note: ids outside [0, A) are unchecked (torch.scatter_ is UB there too).
                return acc + wt_ref[pl.ds(idx, 1), :]    # (1, A)
            # Start the accumulator at the bias; positions 1..S-1 ("other" slice).
            # (S == 1 degenerates to q = bias, matching the reference.)
            acc = lax.fori_loop(1, S, body, b_ref[...], unroll=True)
            rows.append(acc)
        o_ref[...] = jnp.concatenate(rows, axis=0)       # single (B, A) store
    return kernel


def learning_heuristic_forward(x, weight, bias):
    """x: (B, S) int; weight: (A, A) f32 (PyTorch out x in); bias: (A,) f32 -> q: (B, A) f32."""
    B, S = x.shape
    A = weight.shape[0]
    wt = weight.T                 # one-time XLA transpose outside the kernel
    bias2d = bias.reshape(1, A)
    kernel = _make_kernel(B, S, A)
    return pl.pallas_call(
        kernel,
        out_shape=jax.ShapeDtypeStruct((B, A), jnp.float32),
        in_specs=[
            pl.BlockSpec(memory_space=pltpu.SMEM),   # x: control data as scalars
            pl.BlockSpec(memory_space=pltpu.VMEM),   # W^T
            pl.BlockSpec(memory_space=pltpu.VMEM),   # bias (1, A)
        ],
        out_specs=pl.BlockSpec(memory_space=pltpu.VMEM),
    )(x.astype(jnp.int32), wt, bias2d)
    # TODO(synk): if B grows, add grid=(B//TB,) with dimension_semantics=("parallel",)
    # to split the batch across v7x's two TensorCores, and batch many env-step calls
    # into one pallas_call to amortize launch overhead.


def reference_forward(x, weight, bias):
    """Plain-JAX reference mirroring the PyTorch forward."""
    A = weight.shape[0]
    one_hot = jax.nn.one_hot(x, A, dtype=jnp.float32)   # (B, S, A)
    other = one_hot[:, 1:].sum(axis=1)                  # (B, A)
    return other @ weight.T + bias


if __name__ == "__main__":
    B, S, A = 2, 8, 32  # batch=2, seq=8, n_actions=32

    key = jax.random.PRNGKey(0)
    kx, kw, kb = jax.random.split(key, 3)

    # Deterministic synthetic inputs / parameters (nn.Linear(A, A) shapes).
    x = jax.random.randint(kx, (B, S), 0, A, dtype=jnp.int32)
    bound = 1.0 / jnp.sqrt(A)
    weight = jax.random.uniform(kw, (A, A), jnp.float32, -bound, bound)
    bias = jax.random.uniform(kb, (A,), jnp.float32, -bound, bound)

    q = learning_heuristic_forward(x, weight, bias)
    q = jax.block_until_ready(q)

    q_ref = reference_forward(x, weight, bias)
    assert q.shape == (B, A)
    assert jnp.allclose(q, q_ref, atol=1e-5, rtol=1e-5), "mismatch vs reference"

    print("KERNEL_OK")
</pallas_src>

<mosaic_0001>
module attributes {stable_mosaic.version = 11 : i64} {
  func.func @kernel(%arg0: memref<2x8xi32, #tpu.memory_space<smem>>, %arg1: memref<32x32xf32, #tpu.memory_space<vmem>>, %arg2: memref<1x32xf32, #tpu.memory_space<vmem>>, %arg3: memref<2x32xf32, #tpu.memory_space<vmem>>) attributes {dimension_semantics = [], scalar_prefetch = 0 : i64, scratch_operands = 0 : i64, tpu.core_type = #tpu.core_type<tc>} {
    %c0 = arith.constant 0 : index
    %c0_0 = arith.constant 0 : index
    %0 = vector.load %arg2[%c0, %c0_0] : memref<1x32xf32, #tpu.memory_space<vmem>>, vector<1x32xf32>
    %c1_i32 = arith.constant 1 : i32
    %c0_1 = arith.constant 0 : index
    %1 = arith.index_cast %c1_i32 : i32 to index
    %2 = memref.load %arg0[%c0_1, %1] : memref<2x8xi32, #tpu.memory_space<smem>>
    %3 = arith.index_cast %2 : i32 to index
    %c0_2 = arith.constant 0 : index
    %4 = vector.load %arg1[%3, %c0_2] : memref<32x32xf32, #tpu.memory_space<vmem>>, vector<1x32xf32>
    %5 = arith.addf %0, %4 : vector<1x32xf32>
    %c2_i32 = arith.constant 2 : i32
    %c0_3 = arith.constant 0 : index
    %6 = arith.index_cast %c2_i32 : i32 to index
    %7 = memref.load %arg0[%c0_3, %6] : memref<2x8xi32, #tpu.memory_space<smem>>
    %8 = arith.index_cast %7 : i32 to index
    %c0_4 = arith.constant 0 : index
    %9 = vector.load %arg1[%8, %c0_4] : memref<32x32xf32, #tpu.memory_space<vmem>>, vector<1x32xf32>
    %10 = arith.addf %5, %9 : vector<1x32xf32>
    %c3_i32 = arith.constant 3 : i32
    %c0_5 = arith.constant 0 : index
    %11 = arith.index_cast %c3_i32 : i32 to index
    %12 = memref.load %arg0[%c0_5, %11] : memref<2x8xi32, #tpu.memory_space<smem>>
    %13 = arith.index_cast %12 : i32 to index
    %c0_6 = arith.constant 0 : index
    %14 = vector.load %arg1[%13, %c0_6] : memref<32x32xf32, #tpu.memory_space<vmem>>, vector<1x32xf32>
    %15 = arith.addf %10, %14 : vector<1x32xf32>
    %c4_i32 = arith.constant 4 : i32
    %c0_7 = arith.constant 0 : index
    %16 = arith.index_cast %c4_i32 : i32 to index
    %17 = memref.load %arg0[%c0_7, %16] : memref<2x8xi32, #tpu.memory_space<smem>>
    %18 = arith.index_cast %17 : i32 to index
    %c0_8 = arith.constant 0 : index
    %19 = vector.load %arg1[%18, %c0_8] : memref<32x32xf32, #tpu.memory_space<vmem>>, vector<1x32xf32>
    %20 = arith.addf %15, %19 : vector<1x32xf32>
    %c5_i32 = arith.constant 5 : i32
    %c0_9 = arith.constant 0 : index
    %21 = arith.index_cast %c5_i32 : i32 to index
    %22 = memref.load %arg0[%c0_9, %21] : memref<2x8xi32, #tpu.memory_space<smem>>
    %23 = arith.index_cast %22 : i32 to index
    %c0_10 = arith.constant 0 : index
    %24 = vector.load %arg1[%23, %c0_10] : memref<32x32xf32, #tpu.memory_space<vmem>>, vector<1x32xf32>
    %25 = arith.addf %20, %24 : vector<1x32xf32>
    %c6_i32 = arith.constant 6 : i32
    %c0_11 = arith.constant 0 : index
    %26 = arith.index_cast %c6_i32 : i32 to index
    %27 = memref.load %arg0[%c0_11, %26] : memref<2x8xi32, #tpu.memory_space<smem>>
    %28 = arith.index_cast %27 : i32 to index
    %c0_12 = arith.constant 0 : index
    %29 = vector.load %arg1[%28, %c0_12] : memref<32x32xf32, #tpu.memory_space<vmem>>, vector<1x32xf32>
    %30 = arith.addf %25, %29 : vector<1x32xf32>
    %c7_i32 = arith.constant 7 : i32
    %c0_13 = arith.constant 0 : index
    %31 = arith.index_cast %c7_i32 : i32 to index
    %32 = memref.load %arg0[%c0_13, %31] : memref<2x8xi32, #tpu.memory_space<smem>>
    %33 = arith.index_cast %32 : i32 to index
    %c0_14 = arith.constant 0 : index
    %34 = vector.load %arg1[%33, %c0_14] : memref<32x32xf32, #tpu.memory_space<vmem>>, vector<1x32xf32>
    %35 = arith.addf %30, %34 : vector<1x32xf32>
    %c7_i32_15 = arith.constant 7 : i32
    %c0_16 = arith.constant 0 : index
    %c0_17 = arith.constant 0 : index
    %36 = vector.load %arg2[%c0_16, %c0_17] : memref<1x32xf32, #tpu.memory_space<vmem>>, vector<1x32xf32>
    %c1_i32_18 = arith.constant 1 : i32
    %c1 = arith.constant 1 : index
    %37 = arith.index_cast %c1_i32_18 : i32 to index
    %38 = memref.load %arg0[%c1, %37] : memref<2x8xi32, #tpu.memory_space<smem>>
    %39 = arith.index_cast %38 : i32 to index
    %c0_19 = arith.constant 0 : index
    %40 = vector.load %arg1[%39, %c0_19] : memref<32x32xf32, #tpu.memory_space<vmem>>, vector<1x32xf32>
    %41 = arith.addf %36, %40 : vector<1x32xf32>
    %c2_i32_20 = arith.constant 2 : i32
    %c1_21 = arith.constant 1 : index
    %42 = arith.index_cast %c2_i32_20 : i32 to index
    %43 = memref.load %arg0[%c1_21, %42] : memref<2x8xi32, #tpu.memory_space<smem>>
    %44 = arith.index_cast %43 : i32 to index
    %c0_22 = arith.constant 0 : index
    %45 = vector.load %arg1[%44, %c0_22] : memref<32x32xf32, #tpu.memory_space<vmem>>, vector<1x32xf32>
    %46 = arith.addf %41, %45 : vector<1x32xf32>
    %c3_i32_23 = arith.constant 3 : i32
    %c1_24 = arith.constant 1 : index
    %47 = arith.index_cast %c3_i32_23 : i32 to index
    %48 = memref.load %arg0[%c1_24, %47] : memref<2x8xi32, #tpu.memory_space<smem>>
    %49 = arith.index_cast %48 : i32 to index
    %c0_25 = arith.constant 0 : index
    %50 = vector.load %arg1[%49, %c0_25] : memref<32x32xf32, #tpu.memory_space<vmem>>, vector<1x32xf32>
    %51 = arith.addf %46, %50 : vector<1x32xf32>
    %c4_i32_26 = arith.constant 4 : i32
    %c1_27 = arith.constant 1 : index
    %52 = arith.index_cast %c4_i32_26 : i32 to index
    %53 = memref.load %arg0[%c1_27, %52] : memref<2x8xi32, #tpu.memory_space<smem>>
    %54 = arith.index_cast %53 : i32 to index
    %c0_28 = arith.constant 0 : index
    %55 = vector.load %arg1[%54, %c0_28] : memref<32x32xf32, #tpu.memory_space<vmem>>, vector<1x32xf32>
    %56 = arith.addf %51, %55 : vector<1x32xf32>
    %c5_i32_29 = arith.constant 5 : i32
    %c1_30 = arith.constant 1 : index
    %57 = arith.index_cast %c5_i32_29 : i32 to index
    %58 = memref.load %arg0[%c1_30, %57] : memref<2x8xi32, #tpu.memory_space<smem>>
    %59 = arith.index_cast %58 : i32 to index
    %c0_31 = arith.constant 0 : index
    %60 = vector.load %arg1[%59, %c0_31] : memref<32x32xf32, #tpu.memory_space<vmem>>, vector<1x32xf32>
    %61 = arith.addf %56, %60 : vector<1x32xf32>
    %c6_i32_32 = arith.constant 6 : i32
    %c1_33 = arith.constant 1 : index
    %62 = arith.index_cast %c6_i32_32 : i32 to index
    %63 = memref.load %arg0[%c1_33, %62] : memref<2x8xi32, #tpu.memory_space<smem>>
    %64 = arith.index_cast %63 : i32 to index
    %c0_34 = arith.constant 0 : index
    %65 = vector.load %arg1[%64, %c0_34] : memref<32x32xf32, #tpu.memory_space<vmem>>, vector<1x32xf32>
    %66 = arith.addf %61, %65 : vector<1x32xf32>
    %c7_i32_35 = arith.constant 7 : i32
    %c1_36 = arith.constant 1 : index
    %67 = arith.index_cast %c7_i32_35 : i32 to index
    %68 = memref.load %arg0[%c1_36, %67] : memref<2x8xi32, #tpu.memory_space<smem>>
    %69 = arith.index_cast %68 : i32 to index
    %c0_37 = arith.constant 0 : index
    %70 = vector.load %arg1[%69, %c0_37] : memref<32x32xf32, #tpu.memory_space<vmem>>, vector<1x32xf32>
    %71 = arith.addf %66, %70 : vector<1x32xf32>
    %c7_i32_38 = arith.constant 7 : i32
    %72 = tpu.concatenate %35, %71 in 0 : vector<1x32xf32>, vector<1x32xf32> -> vector<2x32xf32>
    %c0_39 = arith.constant 0 : index
    %c0_40 = arith.constant 0 : index
    %73 = vector.load %arg3[%c0_39, %c0_40] : memref<2x32xf32, #tpu.memory_space<vmem>>, vector<2x32xf32>
    tpu.vector_store %arg3[%c0_39, %c0_40], %72 {strides = array<i32>} : memref<2x32xf32, #tpu.memory_space<vmem>>, vector<2x32xf32>,
    return
  }
}

</mosaic_0001>

<llo_original>
// kernel: tpu_custom_call.1
$region0: #{tpu_custom_call.1}
  #allocation0 [shape = 'u32[]', space=smem, size = 0x4, offset = 0x4, fixed_abs, tag = 'smem constant byte address 0x4 - core index']
  #allocation1 [shape = 'u32[144,128]{1,0:T(1,128)}', space=vmem, size = 0x12000, scoped, tag = 'internal scratch']
  %s0 = inlined_call_operand.hbm [shape: s32[2,8], index: 0, kind: input, shape index: {}]
  %s1 = inlined_call_operand.hbm [shape: f32[32,32], index: 1, kind: input, shape index: {}]
  %s2 = inlined_call_operand.vmem [shape: f32[1,32], index: 2, kind: input, shape index: {}]
  %s3 = inlined_call_operand.hbm [shape: f32[2,32], index: 3, kind: output, shape index: {}]
  %s4 = sld [smem:[#allocation0]]
  $region30: #{tpu_custom_call.1} parent=0
    _
  %s6 = ssub.s32 1, %s4
  %s7 = scalar_select 0, %s6, %s4
  $region1: #{tpu_custom_call.1} parent=0
    #allocation2 [shape = 'u8[1024]{0}', space=smem, size = 0x400, scoped, tag = 'input window, operand 0, single buffered']
    #allocation3 [shape = 's32[1]{0}', space=sflag, size = 0x4, scoped, tag = 'scoped memory for tpu_custom_call.1']
    #allocation4 [shape = 's32[1]{0}', space=sflag, size = 0x4, scoped, tag = 'scoped memory for tpu_custom_call.1']
    #allocation5 [shape = 's32[1]{0}', space=sflag, size = 0x4, scoped, tag = 'scoped memory for tpu_custom_call.1']
    #allocation6 [shape = 'u8[16384]{0}', space=vmem, size = 0x4000, scoped, tag = 'input window, operand 1, single buffered']
    #allocation7 [shape = 'u8[1024]{0}', space=vmem, size = 0x400, scoped, tag = 'output window, operand 0, single buffered']
    %8 = vsyncpa [#allocation5], 0
    %9 = vsyncpa [#allocation3], 0
    %10 = vsyncpa [#allocation4], 0
    // Predicated region
    $region2: #{tpu_custom_call.1} parent=1 // pred_check
      _
    $region3: #{tpu_custom_call.1} parent=1 // pred_check_branch
      %12 = sbr.rel (0) target = $region5
    $region4: #{tpu_custom_call.1} parent=1 // pred_region
      %s14 = ssub.s32 32, 32
      %15 = vsyncadd [#allocation5], %s14
      %18 = dma.hbm_to_smem %s0, 32, [#allocation2], [#allocation5]
    $region5: #{tpu_custom_call.1} parent=1 // pred_fallthru
      _
    // Predicated region
    $region6: #{tpu_custom_call.1} parent=1 // pred_check
      _
    $region7: #{tpu_custom_call.1} parent=1 // pred_check_branch
      %20 = sbr.rel (0) target = $region9
    $region8: #{tpu_custom_call.1} parent=1 // pred_region
      %s22 = ssub.s32 512, 512
      %23 = vsyncadd [#allocation3], %s22
      %s24 = sshll.u32 [#allocation6], 4
      %s25 = int_to_ptr.vmem [resolvable:$true] %s24
      %30 = dma.hbm_to_vmem [thread:$0]  %s1, 512, %s25, [#allocation3], 128, 128, 8
    $region9: #{tpu_custom_call.1} parent=1 // pred_fallthru
      _
    // Predicated region
    $region10: #{tpu_custom_call.1} parent=1 // pred_check
      _
    $region11: #{tpu_custom_call.1} parent=1 // pred_check_branch
      %32 = sbr.rel (0) target = $region13
    $region12: #{tpu_custom_call.1} parent=1 // pred_region
      _
    $region13: #{tpu_custom_call.1} parent=1 // pred_fallthru
      _
    // Predicated region
    $region14: #{tpu_custom_call.1} parent=1 // pred_check
      _
    $region15: #{tpu_custom_call.1} parent=1 // pred_check_branch
      %34 = sbr.rel (0) target = $region17
    $region16: #{tpu_custom_call.1} parent=1 // pred_region
      %35 = dma.done [#allocation5], 32
    $region17: #{tpu_custom_call.1} parent=1 // pred_fallthru
      _
    // Predicated region
    $region18: #{tpu_custom_call.1} parent=1 // pred_check
      _
    $region19: #{tpu_custom_call.1} parent=1 // pred_check_branch
      %37 = sbr.rel (0) target = $region21
    $region20: #{tpu_custom_call.1} parent=1 // pred_region
      %38 = dma.done [#allocation3], 512
    $region21: #{tpu_custom_call.1} parent=1 // pred_fallthru
      _
    %39 = sfence
    %v40 = vld [vmem:[%s2] sm:$0x1]
    %s41 = sld [smem:[#allocation2 + $0x1]]
    %s42 = scalar_lea.vmem [#allocation6], %s41
    %v43 = vld [vmem:[%s42] sm:$0x1]
    %v44 = vadd.f32 %v40, %v43
    %s45 = sld [smem:[#allocation2 + $0x2]]
    %s46 = scalar_lea.vmem [#allocation6], %s45
    %v47 = vld [vmem:[%s46] sm:$0x1]
    %v48 = vadd.f32 %v44, %v47
    %s49 = sld [smem:[#allocation2 + $0x3]]
    %s50 = scalar_lea.vmem [#allocation6], %s49
    %v51 = vld [vmem:[%s50] sm:$0x1]
    %v52 = vadd.f32 %v48, %v51
    %s53 = sld [smem:[#allocation2 + $0x4]]
    %s54 = scalar_lea.vmem [#allocation6], %s53
    %v55 = vld [vmem:[%s54] sm:$0x1]
    %v56 = vadd.f32 %v52, %v55
    %s57 = sld [smem:[#allocation2 + $0x5]]
    %s58 = scalar_lea.vmem [#allocation6], %s57
    %v59 = vld [vmem:[%s58] sm:$0x1]
    %v60 = vadd.f32 %v56, %v59
    %s61 = sld [smem:[#allocation2 + $0x6]]
    %s62 = scalar_lea.vmem [#allocation6], %s61
    %v63 = vld [vmem:[%s62] sm:$0x1]
    %v64 = vadd.f32 %v60, %v63
    %s65 = sld [smem:[#allocation2 + $0x7]]
    %s66 = scalar_lea.vmem [#allocation6], %s65
    %v67 = vld [vmem:[%s66] sm:$0x1]
    %v68 = vadd.f32 %v64, %v67
    %s69 = sld [smem:[#allocation2 + $0x81]]
    %s70 = scalar_lea.vmem [#allocation6], %s69
    %v71 = vld [vmem:[%s70] sm:$0x1]
    %v72 = vadd.f32 %v40, %v71
    %s73 = sld [smem:[#allocation2 + $0x82]]
    %s74 = scalar_lea.vmem [#allocation6], %s73
    %v75 = vld [vmem:[%s74] sm:$0x1]
    %v76 = vadd.f32 %v72, %v75
    %s77 = sld [smem:[#allocation2 + $0x83]]
    %s78 = scalar_lea.vmem [#allocation6], %s77
    %v79 = vld [vmem:[%s78] sm:$0x1]
    %v80 = vadd.f32 %v76, %v79
    %s81 = sld [smem:[#allocation2 + $0x84]]
    %s82 = scalar_lea.vmem [#allocation6], %s81
    %v83 = vld [vmem:[%s82] sm:$0x1]
    %v84 = vadd.f32 %v80, %v83
    %s85 = sld [smem:[#allocation2 + $0x85]]
    %s86 = scalar_lea.vmem [#allocation6], %s85
    %v87 = vld [vmem:[%s86] sm:$0x1]
    %v88 = vadd.f32 %v84, %v87
    %s89 = sld [smem:[#allocation2 + $0x86]]
    %s90 = scalar_lea.vmem [#allocation6], %s89
    %v91 = vld [vmem:[%s90] sm:$0x1]
    %v92 = vadd.f32 %v88, %v91
    %s93 = sld [smem:[#allocation2 + $0x87]]
    %s94 = scalar_lea.vmem [#allocation6], %s93
    %v95 = vld [vmem:[%s94] sm:$0x1]
    %v96 = vadd.f32 %v92, %v95
    %v98 = vlaneseq
    %v99 = vshrl.u32 %v98, 7
    %v100 = vsub.s32 0, %v99
    %v101 = vrot.slane %v96, %v100
    %vm103 = vcmask 1040384
    %v104 = vsel %vm103, %v68, %v101
    %vm105 = vcmask 254976
    %106 = vst.msk [vmem:[#allocation7] sm:$0x3] %vm105, %v104
    // Predicated region
    $region22: #{tpu_custom_call.1} parent=1 // pred_check
      _
    $region23: #{tpu_custom_call.1} parent=1 // pred_check_branch
      %108 = sbr.rel (0) target = $region25
    $region24: #{tpu_custom_call.1} parent=1 // pred_region
      %s110 = ssub.s32 32, 32
      %111 = vsyncadd [#allocation4], %s110
      %s113 = sshll.u32 [#allocation7], 4
      %s114 = int_to_ptr.vmem [resolvable:$true] %s113
      %116 = dma.vmem_to_hbm [thread:$0]  %s114, 32, %s3, [#allocation4]
    $region25: #{tpu_custom_call.1} parent=1 // pred_fallthru
      _
    // Predicated region
    $region26: #{tpu_custom_call.1} parent=1 // pred_check
      _
    $region27: #{tpu_custom_call.1} parent=1 // pred_check_branch
      %118 = sbr.rel (0) target = $region29
    $region28: #{tpu_custom_call.1} parent=1 // pred_region
      %119 = dma.done [#allocation4], 32
    $region29: #{tpu_custom_call.1} parent=1 // pred_fallthru
      _
    %120 = vsyncpa [#allocation3], 1
    %121 = vsyncpa [#allocation4], 1
    %122 = vsyncpa [#allocation5], 1

</llo_original>
